<compile_context>
chip_gen: v7x
topology: tpu7x:2x2x1
jax: 0.10.0
libtpu: 0.0.40
codegen_flags: <defaults>
</compile_context>

<pallas_src>
import math

import jax
import jax.numpy as jnp
from jax.experimental import pallas as pl
from jax.experimental.pallas import tpu as pltpu


def _build_pe(d_model: int, max_len: int = 5000, dtype=jnp.float32) -> jnp.ndarray:
    """Replicates the PyTorch __init__ buffer exactly: pe shape (1, max_len, d_model)."""
    position = jnp.arange(0, max_len, dtype=jnp.float32)[:, None]            # (max_len, 1)
    div_term = jnp.exp(
        jnp.arange(0, d_model, 2, dtype=jnp.float32) * -(math.log(10000.0) / d_model)
    )                                                                         # (d_model//2,)
    angles = position * div_term                                              # (max_len, d_model//2)
    pe = jnp.zeros((max_len, d_model), dtype=jnp.float32)
    pe = pe.at[:, 0::2].set(jnp.sin(angles))
    pe = pe.at[:, 1::2].set(jnp.cos(angles))
    return pe[None].astype(dtype)                                             # (1, max_len, d_model)


def _pos_enc_kernel(x_ref, pe_ref, o_ref):
    # x_ref: (Bt, Lt) tile; pe_ref: (1, Lt) tile -> broadcasts over the batch
    # tile (same-vreg add).  The add runs in o_ref's (promoted) dtype so that
    # bf16 x + f32 pe matches PyTorch promotion; for f32 x the cast is a no-op.
    o_ref[...] = x_ref[...].astype(o_ref.dtype) + pe_ref[...]


def _vmem_working_set_bytes(Bt, Lt, x_isz, out_isz, pe_isz):
    # x and out tiles are double-buffered by the BlockSpec pipeline; the
    # (1, Lt) pe block is padded to 8 sublanes in VMEM, so it costs 8*Lt per
    # buffer (x2 for double-buffering), NOT Lt.
    return 2 * Bt * Lt * (x_isz + out_isz) + 2 * 8 * Lt * pe_isz


def _tpu_vmem_capacity_bytes() -> int:
    try:
        return int(pltpu.get_tpu_info().vmem_capacity_bytes)
    except Exception:
        # Conservative (v7x-sized) fallback if the query is unavailable.
        return 64 << 20


def _choose_tiles(B, L, x_isz, out_isz, pe_isz, target_bytes, vmem_budget):
    """Pick (Bt, Lt) obeying the (8, 128) block constraint with ~target-sized x
    tiles, shrinking the lane tile until the full working set (including the
    sublane-padded pe block) fits the VMEM budget."""
    # Sublane-packing-friendly batch tile: 8 (f32) / 16 (bf16) / 32 (int8), or full batch.
    sub = 8 * max(1, 4 // x_isz)
    Bt = sub if B >= sub else B
    if L <= 128:
        return Bt, L                       # lane dim == full array dim (allowed)
    max_lt = max(128, target_bytes // max(1, Bt * x_isz))
    Lt = min((max_lt // 128) * 128, (L // 128) * 128)
    Lt = max(Lt, 128)
    while Lt > 128 and _vmem_working_set_bytes(Bt, Lt, x_isz, out_isz, pe_isz) > vmem_budget:
        Lt = max(128, (int(Lt * 3 // 4) // 128) * 128)
    return Bt, Lt


def positional_encoding(x: jnp.ndarray, pe: jnp.ndarray, *, donate_x: bool = False) -> jnp.ndarray:
    """x: (B, S, D); pe: (1, max_len, D) buffer.  Returns x + pe[:, :S] (promoted dtype)."""
    B, S, D = x.shape
    L = S * D
    out_dtype = jnp.result_type(x.dtype, pe.dtype)

    # Glue (one-time, tiny): slice the buffer prefix, cast once to the promoted
    # dtype, flatten to a lane-dense 2D slab.  x.reshape is a free row-major
    # collapse for contiguous x.
    pe_flat = pe[:, :S, :].astype(out_dtype).reshape(1, L)
    x2 = x.reshape(B, L)

    x_isz = jnp.dtype(x.dtype).itemsize
    out_isz = jnp.dtype(out_dtype).itemsize
    pe_isz = jnp.dtype(out_dtype).itemsize

    # Generation-aware VMEM limit / tile target.
    vmem_cap = _tpu_vmem_capacity_bytes()
    if vmem_cap <= (64 << 20):          # v7x-class: 64 MiB physical per TC
        vmem_limit = 48 << 20
    else:                               # v5e / v6e: 128 MiB physical
        vmem_limit = 64 << 20
    target_bytes = 8 << 20              # per x tile; amortizes ~0.35us/step overhead
    vmem_budget = (vmem_limit * 3) // 4  # headroom under the scoped limit

    Bt, Lt = _choose_tiles(B, L, x_isz, out_isz, pe_isz, target_bytes, vmem_budget)

    nb, nl = pl.cdiv(B, Bt), pl.cdiv(L, Lt)
    # Megacore guard (v7x has 2 TensorCores/chip): don't let a large problem
    # collapse to a single grid block, which would idle the second core.
    if nb == 1 and nl == 1 and L >= 256 and (B * L * x_isz) >= (1 << 20):
        Lt = max(128, (pl.cdiv(L, 2) // 128) * 128)
        nl = pl.cdiv(L, Lt)

    # Lane axis OUTER, batch axis INNER: pe's block index (0, j) is constant
    # across the inner batch loop, so Pallas streams the pe stripe exactly once
    # instead of once per batch tile.
    grid = (nl, nb)

    extra = {}
    if donate_x and x.dtype == out_dtype:
        # Reuse x's HBM buffer for the output when the caller can donate x.
        extra["input_output_aliases"] = {0: 0}

    out = pl.pallas_call(
        _pos_enc_kernel,
        out_shape=jax.ShapeDtypeStruct((B, L), out_dtype),
        grid_spec=pltpu.PrefetchScalarGridSpec(
            num_scalar_prefetch=0,
            grid=grid,
            in_specs=[
                pl.BlockSpec((Bt, Lt), lambda j, i: (i, j)),   # x tile
                pl.BlockSpec((1, Lt), lambda j, i: (0, j)),    # pe stripe (outer-axis only)
            ],
            out_specs=pl.BlockSpec((Bt, Lt), lambda j, i: (i, j)),
        ),
        compiler_params=pltpu.CompilerParams(
            # Pure streaming add, no cross-step dependence: both axes parallel
            # (megacore sharding on v7x).
            dimension_semantics=("parallel", "parallel"),
            vmem_limit_bytes=vmem_limit,
        ),
        **extra,
    )(x2, pe_flat)

    # TODO(synk): if VMEM ever becomes the limiter (v7x), generate pe in-kernel
    # (iota + sin/cos on EUP) instead of streaming it; not needed at these sizes.
    return out.reshape(B, S, D)


if __name__ == "__main__":
    # Small shapes consistent with the module's forward: (batch, seq, d_model)
    B, S, D = 2, 8, 32
    MAX_LEN = 64  # keep the buffer small for the example; semantics identical

    key = jax.random.PRNGKey(0)
    x = jax.random.normal(key, (B, S, D), dtype=jnp.float32)

    pe = _build_pe(D, max_len=MAX_LEN, dtype=jnp.float32)

    out = positional_encoding(x, pe)
    jax.block_until_ready(out)

    # Reference check in plain JAX (PyTorch promotion: f32 out for f32 inputs).
    ref = x + pe[:, :S, :]
    assert out.dtype == ref.dtype, "dtype mismatch vs reference"
    assert jnp.allclose(out, ref, atol=1e-6), "mismatch vs reference"

    print("KERNEL_OK")
</pallas_src>

<mosaic_0001>
module attributes {stable_mosaic.version = 11 : i64} {
  func.func @_pos_enc_kernel(%arg0: i32, %arg1: i32, %arg2: memref<2x256xf32, #tpu.memory_space<vmem>>, %arg3: memref<1x256xf32, #tpu.memory_space<vmem>>, %arg4: memref<2x256xf32, #tpu.memory_space<vmem>>) attributes {dimension_semantics = [#tpu.dimension_semantics<parallel>, #tpu.dimension_semantics<parallel>], iteration_bounds = array<i64: 1, 1>, scalar_prefetch = 0 : i64, scratch_operands = 0 : i64, tpu.core_type = #tpu.core_type<tc>, window_params = [{transform_indices = @transform_0, window_bounds = array<i64: 2, 256>}, {transform_indices = @transform_1, window_bounds = array<i64: 1, 256>}, {transform_indices = @transform_2, window_bounds = array<i64: 2, 256>}]} {
    %c0 = arith.constant 0 : index
    %c0_0 = arith.constant 0 : index
    %0 = vector.load %arg2[%c0, %c0_0] : memref<2x256xf32, #tpu.memory_space<vmem>>, vector<2x256xf32>
    %c0_1 = arith.constant 0 : index
    %c0_2 = arith.constant 0 : index
    %1 = vector.load %arg3[%c0_1, %c0_2] : memref<1x256xf32, #tpu.memory_space<vmem>>, vector<1x256xf32>
    %2 = vector.broadcast %1 : vector<1x256xf32> to vector<2x256xf32>
    %3 = arith.addf %0, %2 : vector<2x256xf32>
    %c0_3 = arith.constant 0 : index
    %c0_4 = arith.constant 0 : index
    %4 = vector.load %arg4[%c0_3, %c0_4] : memref<2x256xf32, #tpu.memory_space<vmem>>, vector<2x256xf32>
    tpu.vector_store %arg4[%c0_3, %c0_4], %3 {strides = array<i32>} : memref<2x256xf32, #tpu.memory_space<vmem>>, vector<2x256xf32>,
    return
  }
  func.func @transform_0(%arg0: i32, %arg1: i32) -> (i32, i32) {
    %c0_i32 = arith.constant 0 : i32
    return %arg1, %arg0 : i32, i32
  }
  func.func @transform_1(%arg0: i32, %arg1: i32) -> (i32, i32) {
    %c0_i32 = arith.constant 0 : i32
    %c0_i32_0 = arith.constant 0 : i32
    return %c0_i32, %arg0 : i32, i32
  }
  func.func @transform_2(%arg0: i32, %arg1: i32) -> (i32, i32) {
    %c0_i32 = arith.constant 0 : i32
    return %arg1, %arg0 : i32, i32
  }
}

</mosaic_0001>

<llo_original>
// kernel: tpu_custom_call.1
$region0: #{tpu_custom_call.1}
  #allocation0 [shape = 'u32[]', space=smem, size = 0x4, offset = 0x4, fixed_abs, tag = 'smem constant byte address 0x4 - core index']
  #allocation1 [shape = 'u32[144,128]{1,0:T(1,128)}', space=vmem, size = 0x12000, scoped, tag = 'internal scratch']
  %s0 = inlined_call_operand.hbm [shape: f32[2,256], index: 0, kind: input, shape index: {}]
  %s1 = inlined_call_operand.vmem [shape: f32[1,256], index: 1, kind: input, shape index: {}]
  %s2 = inlined_call_operand.hbm [shape: f32[2,256], index: 2, kind: output, shape index: {}]
  %s3 = sld [smem:[#allocation0]]
  $region22: #{tpu_custom_call.1} parent=0
    _
  %s5 = ssub.s32 1, %s3
  %s6 = scalar_select 0, %s5, %s3
  $region1: #{tpu_custom_call.1} parent=0
    #allocation2 [shape = 'u8[2048]{0}', space=vmem, size = 0x800, scoped, tag = 'input window, operand 0, single buffered']
    #allocation3 [shape = 's32[1]{0}', space=sflag, size = 0x4, scoped, tag = 'scoped memory for tpu_custom_call.1']
    #allocation4 [shape = 's32[1]{0}', space=sflag, size = 0x4, scoped, tag = 'scoped memory for tpu_custom_call.1']
    #allocation5 [shape = 'u8[2048]{0}', space=vmem, size = 0x800, scoped, tag = 'output window, operand 0, single buffered']
    %7 = vsyncpa [#allocation3], 0
    %8 = vsyncpa [#allocation4], 0
    // Predicated region
    $region2: #{tpu_custom_call.1} parent=1 // pred_check
      _
    $region3: #{tpu_custom_call.1} parent=1 // pred_check_branch
      %10 = sbr.rel (0) target = $region5
    $region4: #{tpu_custom_call.1} parent=1 // pred_region
      %s12 = ssub.s32 64, 64
      %13 = vsyncadd [#allocation3], %s12
      %s15 = sshll.u32 [#allocation2], 4
      %s16 = int_to_ptr.vmem [resolvable:$true] %s15
      %18 = dma.hbm_to_vmem [thread:$0]  %s0, 64, %s16, [#allocation3]
    $region5: #{tpu_custom_call.1} parent=1 // pred_fallthru
      _
    // Predicated region
    $region6: #{tpu_custom_call.1} parent=1 // pred_check
      _
    $region7: #{tpu_custom_call.1} parent=1 // pred_check_branch
      %20 = sbr.rel (0) target = $region9
    $region8: #{tpu_custom_call.1} parent=1 // pred_region
      _
    $region9: #{tpu_custom_call.1} parent=1 // pred_fallthru
      _
    // Predicated region
    $region10: #{tpu_custom_call.1} parent=1 // pred_check
      _
    $region11: #{tpu_custom_call.1} parent=1 // pred_check_branch
      %22 = sbr.rel (0) target = $region13
    $region12: #{tpu_custom_call.1} parent=1 // pred_region
      %23 = dma.done [#allocation3], 64
    $region13: #{tpu_custom_call.1} parent=1 // pred_fallthru
      _
    %v24 = vld [vmem:[#allocation2] sm:$0xf]
    %v25 = vld [vmem:[%s1] sm:$0x3]
    %v27 = vlaneseq
    %v28 = vshrl.u32 %v27, 7
    %v29 = vsub.s32 0, %v28
    %v30 = vrot.slane %v25, %v29
    %v31 = vlaneseq
    %v32 = vshrl.u32 %v31, 7
    %v33 = vsub.s32 1, %v32
    %v34 = vrot.slane %v25, %v33
    %v35 = vcombine.low %v30, %v34
    %v37 = vunpack.c.l.s4 1983009808
    %v38 = vunpack.c.0.s8 %v37
    %v39 = vlaneseq
    %v40 = vshrl.u32 %v39, 7
    %v41 = vsub.s32 %v38, %v40
    %v42 = vrot.slane %v35, %v41
    %v44 = vadd.f32 %v24, %v42
    %45 = vst [vmem:[#allocation5] sm:$0xf] %v44
    // Predicated region
    $region14: #{tpu_custom_call.1} parent=1 // pred_check
      _
    $region15: #{tpu_custom_call.1} parent=1 // pred_check_branch
      %47 = sbr.rel (0) target = $region17
    $region16: #{tpu_custom_call.1} parent=1 // pred_region
      %s49 = ssub.s32 64, 64
      %50 = vsyncadd [#allocation4], %s49
      %s52 = sshll.u32 [#allocation5], 4
      %s53 = int_to_ptr.vmem [resolvable:$true] %s52
      %55 = dma.vmem_to_hbm [thread:$0]  %s53, 64, %s2, [#allocation4]
    $region17: #{tpu_custom_call.1} parent=1 // pred_fallthru
      _
    // Predicated region
    $region18: #{tpu_custom_call.1} parent=1 // pred_check
      _
    $region19: #{tpu_custom_call.1} parent=1 // pred_check_branch
      %57 = sbr.rel (0) target = $region21
    $region20: #{tpu_custom_call.1} parent=1 // pred_region
      %58 = dma.done [#allocation4], 64
    $region21: #{tpu_custom_call.1} parent=1 // pred_fallthru
      _
    %59 = vsyncpa [#allocation3], 1
    %60 = vsyncpa [#allocation4], 1

</llo_original>
